<compile_context>
chip_gen: v5e
topology: v5e:2x2
jax: 0.10.0
libtpu: 0.0.40
codegen_flags: <defaults>
</compile_context>

<pallas_src>
import jax
import jax.numpy as jnp
from jax.experimental import pallas as pl
from jax.experimental.pallas import tpu as pltpu


def _dwconv_kernel(x_ref, xt_ref, xb_ref, w_ref, b_ref, o_ref):
    # x_ref : (Hb, W, Cb)  main input rows (channels on lanes)
    # xt_ref: (1,  W, Cb)  row just above the block (clamped; zeroed if h == 0)
    # xb_ref: (1,  W, Cb)  row just below the block (clamped; zeroed if last h)
    # w_ref : (9,  Cb)     per-channel taps, k = kh*3 + kw
    # b_ref : (1,  Cb)     per-channel bias
    # o_ref : (Hb, W, Cb)  output rows
    Hb, W, Cb = o_ref.shape
    f32 = jnp.float32

    h = pl.program_id(2)
    top_valid = (h > 0).astype(f32)
    bot_valid = (h < pl.num_programs(2) - 1).astype(f32)

    # Loop-invariant values — loaded/broadcast once, closed over by the body.
    w = w_ref[...].astype(f32)                       # (9, Cb)
    wk = [w[k] for k in range(9)]                    # 9 lane vectors (Cb,)
    bias = b_ref[0].astype(f32)                      # (Cb,)
    col = jax.lax.broadcasted_iota(jnp.int32, (W, Cb), 0)
    first_col = col == 0
    last_col = col == (W - 1)

    def shift_w(row, d):
        # s[w] = row[w + d], zero outside [0, W).  Roll uses the (idle) XLU.
        r = pltpu.roll(row, shift=(-d) % W, axis=0)
        if d > 0:
            return jnp.where(last_col, 0.0, r)
        return jnp.where(first_col, 0.0, r)

    def conv_row(xm1, x0, xp1):
        # out[w] = b + sum_{kh,kw} w[kh*3+kw] * x[row-1+kh, w-1+kw]
        acc = bias + wk[4] * x0
        acc = acc + wk[0] * shift_w(xm1, -1) + wk[1] * xm1 + wk[2] * shift_w(xm1, 1)
        acc = acc + wk[3] * shift_w(x0, -1) + wk[5] * shift_w(x0, 1)
        acc = acc + wk[6] * shift_w(xp1, -1) + wk[7] * xp1 + wk[8] * shift_w(xp1, 1)
        return acc

    # Rolling 3-row window kept in vregs; each input row read once, upcast once.
    top = xt_ref[0].astype(f32) * top_valid
    bot = xb_ref[0].astype(f32) * bot_valid
    row0 = x_ref[0].astype(f32)

    def body(r, carry):
        xm1, x0 = carry
        xp1 = x_ref[r + 1].astype(f32)
        o_ref[r] = conv_row(xm1, x0, xp1).astype(o_ref.dtype)
        return (x0, xp1)

    xm1, x0 = jax.lax.fori_loop(0, Hb - 1, body, (top, row0))
    o_ref[Hb - 1] = conv_row(xm1, x0, bot).astype(o_ref.dtype)


def _pick_block_rows(H, W, cb, itemsize, target_bytes=2 << 20):
    """Largest divisor of H whose (Hb, W, cb) block is <= target_bytes."""
    row_bytes = W * cb * itemsize
    max_rows = max(1, target_bytes // row_bytes)
    hb = 1
    for d in range(1, H + 1):
        if H % d == 0 and d <= max_rows:
            hb = d
    if hb < min(8, H):
        # Degenerate divisor structure (e.g. large prime H): fall back to a
        # full plane rather than 1-row blocks.
        hb = H
    return hb


def dwconv_nhwc(x_nhwc, w9, b, *, block_rows=None, vmem_limit_bytes=None):
    """Depthwise 3x3 conv, stride 1, pad 1, on an NHWC tensor (fused path).

    x_nhwc: (N, H, W, C)  channels already on the minor (lane) axis
    w9:     (9, C)        per-channel taps, k = kh*3 + kw
    b:      (1, C)        per-channel bias
    returns (N, H, W, C)
    """
    N, H, W, C = x_nhwc.shape
    LANES = 128

    # Lane-dense channel blocks: pad C up to a multiple of 128 if needed.
    Cp = ((C + LANES - 1) // LANES) * LANES
    if Cp != C:
        x_nhwc = jnp.pad(x_nhwc, ((0, 0), (0, 0), (0, 0), (0, Cp - C)))
        w9 = jnp.pad(w9, ((0, 0), (0, Cp - C)))
        b = jnp.pad(b, ((0, 0), (0, Cp - C)))
    cb = LANES

    itemsize = x_nhwc.dtype.itemsize
    hb = block_rows if block_rows is not None else _pick_block_rows(H, W, cb, itemsize)
    n_h = H // hb
    grid = (Cp // cb, N, n_h)   # channel slowest -> weight/bias DMAs skipped

    # Explicit VMEM budget: double-buffered in/out blocks + halo rows + params.
    blk_io = hb * W * cb * itemsize          # one input or output block
    blk_halo = 2 * W * cb * itemsize
    blk_params = 10 * cb * 4
    need = 2 * (2 * blk_io + blk_halo + blk_params)
    if vmem_limit_bytes is None:
        vmem_limit_bytes = min(int(need * 1.5) + (2 << 20), 64 << 20)

    out = pl.pallas_call(
        _dwconv_kernel,
        out_shape=jax.ShapeDtypeStruct((N, H, W, Cp), x_nhwc.dtype),
        grid_spec=pltpu.PrefetchScalarGridSpec(
            num_scalar_prefetch=0,
            grid=grid,
            in_specs=[
                # main rows [h*hb, (h+1)*hb)
                pl.BlockSpec((None, hb, W, cb), lambda c, n, h: (n, h, 0, c)),
                # top halo row h*hb - 1 (clamped at the image top)
                pl.BlockSpec((None, 1, W, cb),
                             lambda c, n, h: (n, jnp.maximum(h * hb - 1, 0), 0, c)),
                # bottom halo row (h+1)*hb (clamped at the image bottom)
                pl.BlockSpec((None, 1, W, cb),
                             lambda c, n, h: (n, jnp.minimum((h + 1) * hb, H - 1), 0, c)),
                # weights / bias: block index depends only on c (slow axis)
                pl.BlockSpec((9, cb), lambda c, n, h: (0, c)),
                pl.BlockSpec((1, cb), lambda c, n, h: (0, c)),
            ],
            out_specs=pl.BlockSpec((None, hb, W, cb), lambda c, n, h: (n, h, 0, c)),
        ),
        compiler_params=pltpu.CompilerParams(
            dimension_semantics=("parallel", "parallel", "parallel"),
            vmem_limit_bytes=vmem_limit_bytes),
    )(x_nhwc, x_nhwc, x_nhwc, w9, b)

    if Cp != C:
        out = out[..., :C]
    return out


def dwconv(x, weight, bias):
    """PyTorch DWConv.forward equivalent on NCHW tensors.

    x:      (N, C, H, W)
    weight: (C, 1, 3, 3)   (PyTorch depthwise layout)
    bias:   (C,)
    returns (N, C, H, W)

    The transposes below exist only to honor the NCHW module contract; in an
    NHWC end-to-end model call `dwconv_nhwc` directly and they disappear.
    """
    N, C, H, W = x.shape
    x_nhwc = jnp.transpose(x, (0, 2, 3, 1))             # (N, H, W, C)
    w9 = jnp.transpose(weight.reshape(C, 9), (1, 0))    # (9, C), k = kh*3 + kw
    b = bias.reshape(1, C)
    out_nhwc = dwconv_nhwc(x_nhwc, w9, b)
    return jnp.transpose(out_nhwc, (0, 3, 1, 2))


def _reference(x, weight, bias):
    # Pure-JAX reference (grouped conv) for correctness check.
    C = x.shape[1]
    out = jax.lax.conv_general_dilated(
        x, weight, window_strides=(1, 1), padding=((1, 1), (1, 1)),
        dimension_numbers=("NCHW", "OIHW", "NCHW"),
        feature_group_count=C)
    return out + bias.reshape(1, C, 1, 1)


if __name__ == "__main__":
    # Small shapes consistent with DWConv(dim=C) applied to an NCHW tensor.
    N, C, H, W = 2, 4, 16, 16

    key = jax.random.PRNGKey(0)
    kx, kw, kb = jax.random.split(key, 3)

    x = jax.random.normal(kx, (N, C, H, W), dtype=jnp.float32)
    # Conv2d(dim, dim, 3, groups=dim, bias=True): weight (C,1,3,3), bias (C,)
    fan_in = 1 * 3 * 3
    bound = 1.0 / (fan_in ** 0.5)
    weight = jax.random.uniform(kw, (C, 1, 3, 3), minval=-bound, maxval=bound,
                                dtype=jnp.float32)
    bias = jax.random.uniform(kb, (C,), minval=-bound, maxval=bound,
                              dtype=jnp.float32)

    out = dwconv(x, weight, bias)
    out = jax.block_until_ready(out)

    ref = _reference(x, weight, bias)
    assert out.shape == (N, C, H, W)
    assert jnp.allclose(out, ref, atol=1e-5, rtol=1e-5), "mismatch vs reference"

    # Also exercise an H-tiled configuration (multiple H grid steps + halos).
    out_tiled = jax.block_until_ready(
        jnp.transpose(
            dwconv_nhwc(jnp.transpose(x, (0, 2, 3, 1)),
                        jnp.transpose(weight.reshape(C, 9), (1, 0)),
                        bias.reshape(1, C), block_rows=4),
            (0, 3, 1, 2)))
    assert jnp.allclose(out_tiled, ref, atol=1e-5, rtol=1e-5), "tiled mismatch"

    print("KERNEL_OK")
</pallas_src>

<mosaic_0001>
module attributes {stable_mosaic.version = 11 : i64} {
  func.func @_dwconv_kernel(%arg0: i32, %arg1: i32, %arg2: i32, %arg3: memref<1x16x16x128xf32, #tpu.memory_space<vmem>>, %arg4: memref<1x1x16x128xf32, #tpu.memory_space<vmem>>, %arg5: memref<1x1x16x128xf32, #tpu.memory_space<vmem>>, %arg6: memref<9x128xf32, #tpu.memory_space<vmem>>, %arg7: memref<1x128xf32, #tpu.memory_space<vmem>>, %arg8: memref<1x16x16x128xf32, #tpu.memory_space<vmem>>) attributes {dimension_semantics = [#tpu.dimension_semantics<parallel>, #tpu.dimension_semantics<parallel>, #tpu.dimension_semantics<parallel>], iteration_bounds = array<i64: 1, 2, 1>, scalar_prefetch = 0 : i64, scratch_operands = 0 : i64, tpu.core_type = #tpu.core_type<tc>, window_params = [{transform_indices = @transform_0, window_bounds = array<i64: 1, 16, 16, 128>}, {transform_indices = @transform_1, window_bounds = array<i64: 1, 1, 16, 128>}, {transform_indices = @transform_2, window_bounds = array<i64: 1, 1, 16, 128>}, {transform_indices = @transform_3, window_bounds = array<i64: 9, 128>}, {transform_indices = @transform_4, window_bounds = array<i64: 1, 128>}, {transform_indices = @transform_5, window_bounds = array<i64: 1, 16, 16, 128>}]} {
    %c0_i32 = arith.constant 0 : i32
    %0 = arith.cmpi sgt, %arg2, %c0_i32 : i32
    %1 = arith.extui %0 : i1 to i32
    %2 = arith.sitofp %1 : i32 to f32
    %c0_i32_0 = arith.constant 0 : i32
    %3 = arith.cmpi slt, %arg2, %c0_i32_0 : i32
    %4 = arith.extui %3 : i1 to i32
    %5 = arith.sitofp %4 : i32 to f32
    %c0 = arith.constant 0 : index
    %c0_1 = arith.constant 0 : index
    %6 = vector.load %arg6[%c0, %c0_1] : memref<9x128xf32, #tpu.memory_space<vmem>>, vector<9x128xf32>
    %7 = vector.extract_strided_slice %6 {offsets = [0, 0], sizes = [1, 128], strides = [1, 1]} : vector<9x128xf32> to vector<1x128xf32>
    %8 = vector.shape_cast %7 : vector<1x128xf32> to vector<128xf32>
    %9 = vector.extract_strided_slice %6 {offsets = [1, 0], sizes = [1, 128], strides = [1, 1]} : vector<9x128xf32> to vector<1x128xf32>
    %10 = vector.shape_cast %9 : vector<1x128xf32> to vector<128xf32>
    %11 = vector.extract_strided_slice %6 {offsets = [2, 0], sizes = [1, 128], strides = [1, 1]} : vector<9x128xf32> to vector<1x128xf32>
    %12 = vector.shape_cast %11 : vector<1x128xf32> to vector<128xf32>
    %13 = vector.extract_strided_slice %6 {offsets = [3, 0], sizes = [1, 128], strides = [1, 1]} : vector<9x128xf32> to vector<1x128xf32>
    %14 = vector.shape_cast %13 : vector<1x128xf32> to vector<128xf32>
    %15 = vector.extract_strided_slice %6 {offsets = [4, 0], sizes = [1, 128], strides = [1, 1]} : vector<9x128xf32> to vector<1x128xf32>
    %16 = vector.shape_cast %15 : vector<1x128xf32> to vector<128xf32>
    %17 = vector.extract_strided_slice %6 {offsets = [5, 0], sizes = [1, 128], strides = [1, 1]} : vector<9x128xf32> to vector<1x128xf32>
    %18 = vector.shape_cast %17 : vector<1x128xf32> to vector<128xf32>
    %19 = vector.extract_strided_slice %6 {offsets = [6, 0], sizes = [1, 128], strides = [1, 1]} : vector<9x128xf32> to vector<1x128xf32>
    %20 = vector.shape_cast %19 : vector<1x128xf32> to vector<128xf32>
    %21 = vector.extract_strided_slice %6 {offsets = [7, 0], sizes = [1, 128], strides = [1, 1]} : vector<9x128xf32> to vector<1x128xf32>
    %22 = vector.shape_cast %21 : vector<1x128xf32> to vector<128xf32>
    %23 = vector.extract_strided_slice %6 {offsets = [8, 0], sizes = [1, 128], strides = [1, 1]} : vector<9x128xf32> to vector<1x128xf32>
    %24 = vector.shape_cast %23 : vector<1x128xf32> to vector<128xf32>
    %c0_2 = arith.constant 0 : index
    %c0_3 = arith.constant 0 : index
    %25 = vector.load %arg7[%c0_2, %c0_3] : memref<1x128xf32, #tpu.memory_space<vmem>>, vector<1x128xf32>
    %26 = vector.shape_cast %25 : vector<1x128xf32> to vector<128xf32>
    %27 = tpu.iota {dimensions = array<i32: 0>} : vector<16x128xi32>
    %c0_i32_4 = arith.constant 0 : i32
    %28 = vector.broadcast %c0_i32_4 : i32 to vector<16x128xi32>
    %29 = arith.cmpi eq, %27, %28 : vector<16x128xi32>
    %c15_i32 = arith.constant 15 : i32
    %30 = vector.broadcast %c15_i32 : i32 to vector<16x128xi32>
    %31 = arith.cmpi eq, %27, %30 : vector<16x128xi32>
    %c0_5 = arith.constant 0 : index
    %c0_6 = arith.constant 0 : index
    %c0_7 = arith.constant 0 : index
    %c0_8 = arith.constant 0 : index
    %32 = vector.load %arg4[%c0_5, %c0_6, %c0_7, %c0_8] : memref<1x1x16x128xf32, #tpu.memory_space<vmem>>, vector<1x1x16x128xf32>
    %33 = vector.shape_cast %32 : vector<1x1x16x128xf32> to vector<16x128xf32>
    %34 = vector.broadcast %2 : f32 to vector<16x128xf32>
    %35 = arith.mulf %33, %34 : vector<16x128xf32>
    %c0_9 = arith.constant 0 : index
    %c0_10 = arith.constant 0 : index
    %c0_11 = arith.constant 0 : index
    %c0_12 = arith.constant 0 : index
    %36 = vector.load %arg5[%c0_9, %c0_10, %c0_11, %c0_12] : memref<1x1x16x128xf32, #tpu.memory_space<vmem>>, vector<1x1x16x128xf32>
    %37 = vector.shape_cast %36 : vector<1x1x16x128xf32> to vector<16x128xf32>
    %38 = vector.broadcast %5 : f32 to vector<16x128xf32>
    %39 = arith.mulf %37, %38 : vector<16x128xf32>
    %c0_13 = arith.constant 0 : index
    %c0_14 = arith.constant 0 : index
    %c0_15 = arith.constant 0 : index
    %c0_16 = arith.constant 0 : index
    %40 = vector.load %arg3[%c0_13, %c0_14, %c0_15, %c0_16] : memref<1x16x16x128xf32, #tpu.memory_space<vmem>>, vector<1x1x16x128xf32>
    %41 = vector.shape_cast %40 : vector<1x1x16x128xf32> to vector<16x128xf32>
    %c0_i32_17 = arith.constant 0 : i32
    %c15_i32_18 = arith.constant 15 : i32
    %42 = arith.addi %c0_i32_17, %c15_i32_18 : i32
    %c1_i32 = arith.constant 1 : i32
    %43:2 = scf.for %arg9 = %c0_i32_17 to %42 step %c1_i32 iter_args(%arg10 = %35, %arg11 = %41) -> (vector<16x128xf32>, vector<16x128xf32>)  : i32 {
      %c1_i32_34 = arith.constant 1 : i32
      %103 = arith.addi %arg9, %c1_i32_34 : i32
      %c0_35 = arith.constant 0 : index
      %104 = arith.index_cast %103 : i32 to index
      %c0_36 = arith.constant 0 : index
      %c0_37 = arith.constant 0 : index
      %105 = vector.load %arg3[%c0_35, %104, %c0_36, %c0_37] : memref<1x16x16x128xf32, #tpu.memory_space<vmem>>, vector<1x1x16x128xf32>
      %106 = vector.shape_cast %105 : vector<1x1x16x128xf32> to vector<16x128xf32>
      %107 = vector.shape_cast %16 : vector<128xf32> to vector<1x128xf32>
      %108 = vector.broadcast %107 : vector<1x128xf32> to vector<16x128xf32>
      %109 = arith.mulf %108, %arg11 : vector<16x128xf32>
      %110 = vector.shape_cast %26 : vector<128xf32> to vector<1x128xf32>
      %111 = vector.broadcast %110 : vector<1x128xf32> to vector<16x128xf32>
      %112 = arith.addf %111, %109 : vector<16x128xf32>
      %c1_i32_38 = arith.constant 1 : i32
      %113 = tpu.dynamic_rotate %arg10 by %c1_i32_38 dim 0 : vector<16x128xf32>, i32 -> vector<16x128xf32>
      %cst_39 = arith.constant 0.000000e+00 : f32
      %114 = vector.broadcast %cst_39 : f32 to vector<16x128xf32>
      %115 = arith.select %29, %114, %113 : vector<16x128xi1>, vector<16x128xf32>
      %116 = vector.shape_cast %8 : vector<128xf32> to vector<1x128xf32>
      %117 = vector.broadcast %116 : vector<1x128xf32> to vector<16x128xf32>
      %118 = arith.mulf %117, %115 : vector<16x128xf32>
      %119 = arith.addf %112, %118 : vector<16x128xf32>
      %120 = vector.shape_cast %10 : vector<128xf32> to vector<1x128xf32>
      %121 = vector.broadcast %120 : vector<1x128xf32> to vector<16x128xf32>
      %122 = arith.mulf %121, %arg10 : vector<16x128xf32>
      %123 = arith.addf %119, %122 : vector<16x128xf32>
      %c15_i32_40 = arith.constant 15 : i32
      %124 = tpu.dynamic_rotate %arg10 by %c15_i32_40 dim 0 : vector<16x128xf32>, i32 -> vector<16x128xf32>
      %cst_41 = arith.constant 0.000000e+00 : f32
      %125 = vector.broadcast %cst_41 : f32 to vector<16x128xf32>
      %126 = arith.select %31, %125, %124 : vector<16x128xi1>, vector<16x128xf32>
      %127 = vector.shape_cast %12 : vector<128xf32> to vector<1x128xf32>
      %128 = vector.broadcast %127 : vector<1x128xf32> to vector<16x128xf32>
      %129 = arith.mulf %128, %126 : vector<16x128xf32>
      %130 = arith.addf %123, %129 : vector<16x128xf32>
      %c1_i32_42 = arith.constant 1 : i32
      %131 = tpu.dynamic_rotate %arg11 by %c1_i32_42 dim 0 : vector<16x128xf32>, i32 -> vector<16x128xf32>
      %cst_43 = arith.constant 0.000000e+00 : f32
      %132 = vector.broadcast %cst_43 : f32 to vector<16x128xf32>
      %133 = arith.select %29, %132, %131 : vector<16x128xi1>, vector<16x128xf32>
      %134 = vector.shape_cast %14 : vector<128xf32> to vector<1x128xf32>
      %135 = vector.broadcast %134 : vector<1x128xf32> to vector<16x128xf32>
      %136 = arith.mulf %135, %133 : vector<16x128xf32>
      %137 = arith.addf %130, %136 : vector<16x128xf32>
      %c15_i32_44 = arith.constant 15 : i32
      %138 = tpu.dynamic_rotate %arg11 by %c15_i32_44 dim 0 : vector<16x128xf32>, i32 -> vector<16x128xf32>
      %cst_45 = arith.constant 0.000000e+00 : f32
      %139 = vector.broadcast %cst_45 : f32 to vector<16x128xf32>
      %140 = arith.select %31, %139, %138 : vector<16x128xi1>, vector<16x128xf32>
      %141 = vector.shape_cast %18 : vector<128xf32> to vector<1x128xf32>
      %142 = vector.broadcast %141 : vector<1x128xf32> to vector<16x128xf32>
      %143 = arith.mulf %142, %140 : vector<16x128xf32>
      %144 = arith.addf %137, %143 : vector<16x128xf32>
      %c1_i32_46 = arith.constant 1 : i32
      %145 = tpu.dynamic_rotate %106 by %c1_i32_46 dim 0 : vector<16x128xf32>, i32 -> vector<16x128xf32>
      %cst_47 = arith.constant 0.000000e+00 : f32
      %146 = vector.broadcast %cst_47 : f32 to vector<16x128xf32>
      %147 = arith.select %29, %146, %145 : vector<16x128xi1>, vector<16x128xf32>
      %148 = vector.shape_cast %20 : vector<128xf32> to vector<1x128xf32>
      %149 = vector.broadcast %148 : vector<1x128xf32> to vector<16x128xf32>
      %150 = arith.mulf %149, %147 : vector<16x128xf32>
      %151 = arith.addf %144, %150 : vector<16x128xf32>
      %152 = vector.shape_cast %22 : vector<128xf32> to vector<1x128xf32>
      %153 = vector.broadcast %152 : vector<1x128xf32> to vector<16x128xf32>
      %154 = arith.mulf %153, %106 : vector<16x128xf32>
      %155 = arith.addf %151, %154 : vector<16x128xf32>
      %c15_i32_48 = arith.constant 15 : i32
      %156 = tpu.dynamic_rotate %106 by %c15_i32_48 dim 0 : vector<16x128xf32>, i32 -> vector<16x128xf32>
      %cst_49 = arith.constant 0.000000e+00 : f32
      %157 = vector.broadcast %cst_49 : f32 to vector<16x128xf32>
      %158 = arith.select %31, %157, %156 : vector<16x128xi1>, vector<16x128xf32>
      %159 = vector.shape_cast %24 : vector<128xf32> to vector<1x128xf32>
      %160 = vector.broadcast %159 : vector<1x128xf32> to vector<16x128xf32>
      %161 = arith.mulf %160, %158 : vector<16x128xf32>
      %162 = arith.addf %155, %161 : vector<16x128xf32>
      %c0_50 = arith.constant 0 : index
      %163 = arith.index_cast %arg9 : i32 to index
      %c0_51 = arith.constant 0 : index
      %c0_52 = arith.constant 0 : index
      %164 = vector.load %arg8[%c0_50, %163, %c0_51, %c0_52] : memref<1x16x16x128xf32, #tpu.memory_space<vmem>>, vector<1x1x16x128xf32>
      %165 = vector.shape_cast %164 : vector<1x1x16x128xf32> to vector<16x128xf32>
      %166 = vector.shape_cast %162 : vector<16x128xf32> to vector<1x1x16x128xf32>
      tpu.vector_store %arg8[%c0_50, %163, %c0_51, %c0_52], %166 {strides = array<i32>} : memref<1x16x16x128xf32, #tpu.memory_space<vmem>>, vector<1x1x16x128xf32>,
      scf.yield %arg11, %106 : vector<16x128xf32>, vector<16x128xf32>
    }
    %c15_i32_19 = arith.constant 15 : i32
    %44 = vector.shape_cast %16 : vector<128xf32> to vector<1x128xf32>
    %45 = vector.broadcast %44 : vector<1x128xf32> to vector<16x128xf32>
    %46 = arith.mulf %45, %43#1 : vector<16x128xf32>
    %47 = vector.shape_cast %26 : vector<128xf32> to vector<1x128xf32>
    %48 = vector.broadcast %47 : vector<1x128xf32> to vector<16x128xf32>
    %49 = arith.addf %48, %46 : vector<16x128xf32>
    %c1_i32_20 = arith.constant 1 : i32
    %50 = tpu.dynamic_rotate %43#0 by %c1_i32_20 dim 0 : vector<16x128xf32>, i32 -> vector<16x128xf32>
    %cst = arith.constant 0.000000e+00 : f32
    %51 = vector.broadcast %cst : f32 to vector<16x128xf32>
    %52 = arith.select %29, %51, %50 : vector<16x128xi1>, vector<16x128xf32>
    %53 = vector.shape_cast %8 : vector<128xf32> to vector<1x128xf32>
    %54 = vector.broadcast %53 : vector<1x128xf32> to vector<16x128xf32>
    %55 = arith.mulf %54, %52 : vector<16x128xf32>
    %56 = arith.addf %49, %55 : vector<16x128xf32>
    %57 = vector.shape_cast %10 : vector<128xf32> to vector<1x128xf32>
    %58 = vector.broadcast %57 : vector<1x128xf32> to vector<16x128xf32>
    %59 = arith.mulf %58, %43#0 : vector<16x128xf32>
    %60 = arith.addf %56, %59 : vector<16x128xf32>
    %c15_i32_21 = arith.constant 15 : i32
    %61 = tpu.dynamic_rotate %43#0 by %c15_i32_21 dim 0 : vector<16x128xf32>, i32 -> vector<16x128xf32>
    %cst_22 = arith.constant 0.000000e+00 : f32
    %62 = vector.broadcast %cst_22 : f32 to vector<16x128xf32>
    %63 = arith.select %31, %62, %61 : vector<16x128xi1>, vector<16x128xf32>
    %64 = vector.shape_cast %12 : vector<128xf32> to vector<1x128xf32>
    %65 = vector.broadcast %64 : vector<1x128xf32> to vector<16x128xf32>
    %66 = arith.mulf %65, %63 : vector<16x128xf32>
    %67 = arith.addf %60, %66 : vector<16x128xf32>
    %c1_i32_23 = arith.constant 1 : i32
    %68 = tpu.dynamic_rotate %43#1 by %c1_i32_23 dim 0 : vector<16x128xf32>, i32 -> vector<16x128xf32>
    %cst_24 = arith.constant 0.000000e+00 : f32
    %69 = vector.broadcast %cst_24 : f32 to vector<16x128xf32>
    %70 = arith.select %29, %69, %68 : vector<16x128xi1>, vector<16x128xf32>
    %71 = vector.shape_cast %14 : vector<128xf32> to vector<1x128xf32>
    %72 = vector.broadcast %71 : vector<1x128xf32> to vector<16x128xf32>
    %73 = arith.mulf %72, %70 : vector<16x128xf32>
    %74 = arith.addf %67, %73 : vector<16x128xf32>
    %c15_i32_25 = arith.constant 15 : i32
    %75 = tpu.dynamic_rotate %43#1 by %c15_i32_25 dim 0 : vector<16x128xf32>, i32 -> vector<16x128xf32>
    %cst_26 = arith.constant 0.000000e+00 : f32
    %76 = vector.broadcast %cst_26 : f32 to vector<16x128xf32>
    %77 = arith.select %31, %76, %75 : vector<16x128xi1>, vector<16x128xf32>
    %78 = vector.shape_cast %18 : vector<128xf32> to vector<1x128xf32>
    %79 = vector.broadcast %78 : vector<1x128xf32> to vector<16x128xf32>
    %80 = arith.mulf %79, %77 : vector<16x128xf32>
    %81 = arith.addf %74, %80 : vector<16x128xf32>
    %c1_i32_27 = arith.constant 1 : i32
    %82 = tpu.dynamic_rotate %39 by %c1_i32_27 dim 0 : vector<16x128xf32>, i32 -> vector<16x128xf32>
    %cst_28 = arith.constant 0.000000e+00 : f32
    %83 = vector.broadcast %cst_28 : f32 to vector<16x128xf32>
    %84 = arith.select %29, %83, %82 : vector<16x128xi1>, vector<16x128xf32>
    %85 = vector.shape_cast %20 : vector<128xf32> to vector<1x128xf32>
    %86 = vector.broadcast %85 : vector<1x128xf32> to vector<16x128xf32>
    %87 = arith.mulf %86, %84 : vector<16x128xf32>
    %88 = arith.addf %81, %87 : vector<16x128xf32>
    %89 = vector.shape_cast %22 : vector<128xf32> to vector<1x128xf32>
    %90 = vector.broadcast %89 : vector<1x128xf32> to vector<16x128xf32>
    %91 = arith.mulf %90, %39 : vector<16x128xf32>
    %92 = arith.addf %88, %91 : vector<16x128xf32>
    %c15_i32_29 = arith.constant 15 : i32
    %93 = tpu.dynamic_rotate %39 by %c15_i32_29 dim 0 : vector<16x128xf32>, i32 -> vector<16x128xf32>
    %cst_30 = arith.constant 0.000000e+00 : f32
    %94 = vector.broadcast %cst_30 : f32 to vector<16x128xf32>
    %95 = arith.select %31, %94, %93 : vector<16x128xi1>, vector<16x128xf32>
    %96 = vector.shape_cast %24 : vector<128xf32> to vector<1x128xf32>
    %97 = vector.broadcast %96 : vector<1x128xf32> to vector<16x128xf32>
    %98 = arith.mulf %97, %95 : vector<16x128xf32>
    %99 = arith.addf %92, %98 : vector<16x128xf32>
    %c0_31 = arith.constant 0 : index
    %c15 = arith.constant 15 : index
    %c0_32 = arith.constant 0 : index
    %c0_33 = arith.constant 0 : index
    %100 = vector.load %arg8[%c0_31, %c15, %c0_32, %c0_33] : memref<1x16x16x128xf32, #tpu.memory_space<vmem>>, vector<1x1x16x128xf32>
    %101 = vector.shape_cast %100 : vector<1x1x16x128xf32> to vector<16x128xf32>
    %102 = vector.shape_cast %99 : vector<16x128xf32> to vector<1x1x16x128xf32>
    tpu.vector_store %arg8[%c0_31, %c15, %c0_32, %c0_33], %102 {strides = array<i32>} : memref<1x16x16x128xf32, #tpu.memory_space<vmem>>, vector<1x1x16x128xf32>,
    return
  }
  func.func @transform_0(%arg0: i32, %arg1: i32, %arg2: i32) -> (i32, i32, i32, i32) {
    %c0_i32 = arith.constant 0 : i32
    %c0_i32_0 = arith.constant 0 : i32
    return %arg1, %arg2, %c0_i32, %arg0 : i32, i32, i32, i32
  }
  func.func @transform_1(%arg0: i32, %arg1: i32, %arg2: i32) -> (i32, i32, i32, i32) {
    %c16_i32 = arith.constant 16 : i32
    %0 = arith.muli %arg2, %c16_i32 : i32
    %c1_i32 = arith.constant 1 : i32
    %1 = arith.subi %0, %c1_i32 : i32
    %c0_i32 = arith.constant 0 : i32
    %2 = arith.maxsi %1, %c0_i32 : i32
    %c0_i32_0 = arith.constant 0 : i32
    %c0_i32_1 = arith.constant 0 : i32
    return %arg1, %2, %c0_i32_0, %arg0 : i32, i32, i32, i32
  }
  func.func @transform_2(%arg0: i32, %arg1: i32, %arg2: i32) -> (i32, i32, i32, i32) {
    %c1_i32 = arith.constant 1 : i32
    %0 = arith.addi %arg2, %c1_i32 : i32
    %c16_i32 = arith.constant 16 : i32
    %1 = arith.muli %0, %c16_i32 : i32
    %c15_i32 = arith.constant 15 : i32
    %2 = arith.minsi %1, %c15_i32 : i32
    %c0_i32 = arith.constant 0 : i32
    %c0_i32_0 = arith.constant 0 : i32
    return %arg1, %2, %c0_i32, %arg0 : i32, i32, i32, i32
  }
  func.func @transform_3(%arg0: i32, %arg1: i32, %arg2: i32) -> (i32, i32) {
    %c0_i32 = arith.constant 0 : i32
    %c0_i32_0 = arith.constant 0 : i32
    return %c0_i32, %arg0 : i32, i32
  }
  func.func @transform_4(%arg0: i32, %arg1: i32, %arg2: i32) -> (i32, i32) {
    %c0_i32 = arith.constant 0 : i32
    %c0_i32_0 = arith.constant 0 : i32
    return %c0_i32, %arg0 : i32, i32
  }
  func.func @transform_5(%arg0: i32, %arg1: i32, %arg2: i32) -> (i32, i32, i32, i32) {
    %c0_i32 = arith.constant 0 : i32
    %c0_i32_0 = arith.constant 0 : i32
    return %arg1, %arg2, %c0_i32, %arg0 : i32, i32, i32, i32
  }
}

</mosaic_0001>

<llo_original>
// kernel: tpu_custom_call.1
$region0: #{tpu_custom_call.1}
  #allocation0 [shape = 'u32[]', space=smem, size = 0x4, offset = 0x4, fixed_abs, tag = 'smem constant byte address 0x4 - core index']
  #allocation1 [shape = 'u32[72,128]{1,0:T(1,128)}', space=vmem, size = 0x9000, scoped, tag = 'internal scratch']
  %s0 = inlined_call_operand.hbm [shape: f32[2,16,16,128], index: 0, kind: input, shape index: {}]
  %s1 = inlined_call_operand.hbm [shape: f32[2,16,16,128], index: 1, kind: input, shape index: {}]
  %s2 = inlined_call_operand.hbm [shape: f32[2,16,16,128], index: 2, kind: input, shape index: {}]
  %s3 = inlined_call_operand.hbm [shape: f32[9,128], index: 3, kind: input, shape index: {}]
  %s4 = inlined_call_operand.vmem [shape: f32[1,128], index: 4, kind: input, shape index: {}]
  %s5 = inlined_call_operand.hbm [shape: f32[2,16,16,128], index: 5, kind: output, shape index: {}]
  %s6 = sld [smem:[#allocation0]]
  $region76: #{tpu_custom_call.1} parent=0
    _
  %s8 = ssub.s32 1, %s6
  %s9 = scalar_select 0, %s8, %s6
  $region1: #{tpu_custom_call.1} parent=0
    #allocation2 [shape = 'u8[262144]{0}', space=vmem, size = 0x40000, scoped, tag = 'input window, operand 0']
    #allocation3 [shape = 's32[2]{0}', space=sflag, size = 0x8, scoped, tag = 'scoped memory for tpu_custom_call.1']
    #allocation4 [shape = 's32[2]{0}', space=sflag, size = 0x8, scoped, tag = 'scoped memory for tpu_custom_call.1']
    #allocation5 [shape = 'u8[16384]{0}', space=vmem, size = 0x4000, scoped, tag = 'input window, operand 1']
    #allocation6 [shape = 's32[2]{0}', space=sflag, size = 0x8, scoped, tag = 'scoped memory for tpu_custom_call.1']
    #allocation7 [shape = 'u8[16384]{0}', space=vmem, size = 0x4000, scoped, tag = 'input window, operand 2']
    #allocation8 [shape = 'u8[8192]{0}', space=vmem, size = 0x2000, scoped, tag = 'input window, operand 3, single buffered']
    #allocation9 [shape = 's32[1]{0}', space=sflag, size = 0x4, scoped, tag = 'scoped memory for tpu_custom_call.1']
    #allocation10 [shape = 'u8[262144]{0}', space=vmem, size = 0x40000, scoped, tag = 'output window, operand 0']
    %10 = vsyncpa [#allocation3], 0
    %s11 = scalar_lea.sflag [#allocation3], 1
    %12 = vsyncpa %s11, 0
    %13 = vsyncpa [#allocation6], 0
    %s14 = scalar_lea.sflag [#allocation6], 1
    %15 = vsyncpa %s14, 0
    %16 = vsyncpa [#allocation9], 0
    %17 = vsyncpa [#allocation4], 0
    %s18 = scalar_lea.sflag [#allocation4], 1
    %19 = vsyncpa %s18, 0
    loop: start=0, step=1, limit=4
    $region2: #{tpu_custom_call.1} parent=1 // loop_pre_header
      _
    $region3: #{tpu_custom_call.1} parent=1 // loop_header
      %s21 = sphi 0, %s25
      %p22 = scmp.ge.s32.totalorder %s21, 4
      %s28 = sphi 0, %s47
      %s29 = sphi 0, %s43
      %s30 = sphi 0, %s39
      %s31 = sphi 0, %s28
      %s32 = sphi 0, %s29
      %s33 = sphi 0, %s30
      %s34 = sphi 0, %s31
      %s35 = sphi 0, %s32
      %s36 = sphi 0, %s33
      %s54 = sphi 0, %s56
      %s57 = sphi 0, %s54
      %s58 = sphi 0, %s57
      %s74 = sphi 0, %s58
      %s92 = sphi 0, %s94
      %s95 = sphi 0, %s92
      %s96 = sphi 0, %s95
      %s112 = sphi 0, %s96
      %s130 = sphi 0, %s132
      %s133 = sphi 0, %s130
      %s134 = sphi 0, %s133
      %s150 = sphi 0, %s134
      %s156 = sphi 0, %s158
      %s159 = sphi 0, %s156
      %s160 = sphi 0, %s159
      %s176 = sphi 0, %s160
      %s182 = sphi 0, %s184
      %s185 = sphi 0, %s182
      %s186 = sphi 0, %s185
      %s202 = sphi 0, %s186
      %s212 = sphi 0, %s214
      %s215 = sphi 0, %s212
      %s216 = sphi 0, %s215
      %s232 = sphi 0, %s216
    $region4: #{tpu_custom_call.1} parent=1 // loop_header_branch
      %24 = sbr.rel (%p22) target = $region8
    $region5: #{tpu_custom_call.1} parent=1 // loop_body
      %s26 = ssub.s32 %s21, 1
      %s27 = ssub.s32 %s21, 2
      %s37 = sadd.s32 1, %s30
      %p38 = scmp.ge.s32.totalorder %s37, 1
      %s39 = scalar_select %p38, 0, %s37
      %s40 = sadd.s32 1, %s29
      %s41 = scalar_select %p38, %s40, %s29
      %p42 = scmp.ge.s32.totalorder %s41, 2
      %s43 = scalar_select %p42, 0, %s41
      %s44 = sadd.s32 1, %s28
      %s45 = scalar_select %p42, %s44, %s28
      %p46 = scmp.ge.s32.totalorder %s45, 1
      %s47 = scalar_select %p46, 0, %s45
      %s48 = ssub.s32 %s29, %s43
      %s49 = ssub.s32 %s30, %s39
      %s50 = sor.u32 %s48, %s49
      %s51 = ssub.s32 %s28, %s47
      %s52 = sor.u32 %s50, %s51
      %p53 = scmp.eq.s32.totalorder %s52, 0
      %s55 = sadd.s32 %s54, 1
      %s56 = scalar_select %p53, %s54, %s55
      %p59 = pneg %p53
      %p60 = scmp.eq.s32.totalorder %s21, 1
      %p61 = por %p59, %p60
      %p62 = scmp.ne.s32.totalorder %s54, %s57
      %p63 = scmp.eq.s32.totalorder %s21, 0
      %p64 = por %p62, %p63
      %p65 = scmp.ne.s32.totalorder %s54, %s57
      %p66 = scmp.eq.s32.totalorder %s26, 1
      %p67 = por %p65, %p66
      %p68 = scmp.ne.s32.totalorder %s57, %s58
      %p69 = scmp.eq.s32.totalorder %s26, 0
      %p70 = por %p68, %p69
      %p71 = scmp.ne.s32.totalorder %s57, %s58
      %p72 = scmp.eq.s32.totalorder %s27, 1
      %p73 = por %p71, %p72
      %p75 = scmp.ne.s32.totalorder %s58, %s74
      %p76 = scmp.eq.s32.totalorder %s27, 0
      %p77 = por %p75, %p76
      %s78 = smul.u32 %s30, 16
      %s79 = ssub.s32 %s78, 1
      %p80 = scmp.gt.s32.totalorder %s79, 0
      %s81 = scalar_select %p80, %s79, 0
      %s82 = smul.u32 %s39, 16
      %s83 = ssub.s32 %s82, 1
      %p84 = scmp.gt.s32.totalorder %s83, 0
      %s85 = scalar_select %p84, %s83, 0
      %s86 = ssub.s32 %s29, %s43
      %s87 = ssub.s32 %s81, %s85
      %s88 = sor.u32 %s86, %s87
      %s89 = ssub.s32 %s28, %s47
      %s90 = sor.u32 %s88, %s89
      %p91 = scmp.eq.s32.totalorder %s90, 0
      %s93 = sadd.s32 %s92, 1
      %s94 = scalar_select %p91, %s92, %s93
      %p97 = pneg %p91
      %p98 = scmp.eq.s32.totalorder %s21, 1
      %p99 = por %p97, %p98
      %p100 = scmp.ne.s32.totalorder %s92, %s95
      %p101 = scmp.eq.s32.totalorder %s21, 0
      %p102 = por %p100, %p101
      %p103 = scmp.ne.s32.totalorder %s92, %s95
      %p104 = scmp.eq.s32.totalorder %s26, 1
      %p105 = por %p103, %p104
      %p106 = scmp.ne.s32.totalorder %s95, %s96
      %p107 = scmp.eq.s32.totalorder %s26, 0
      %p108 = por %p106, %p107
      %p109 = scmp.ne.s32.totalorder %s95, %s96
      %p110 = scmp.eq.s32.totalorder %s27, 1
      %p111 = por %p109, %p110
      %p113 = scmp.ne.s32.totalorder %s96, %s112
      %p114 = scmp.eq.s32.totalorder %s27, 0
      %p115 = por %p113, %p114
      %s116 = sadd.s32 %s30, 1
      %s117 = smul.u32 %s116, 16
      %p118 = scmp.lt.s32.totalorder %s117, 15
      %s119 = scalar_select %p118, %s117, 15
      %s120 = sadd.s32 %s39, 1
      %s121 = smul.u32 %s120, 16
      %p122 = scmp.lt.s32.totalorder %s121, 15
      %s123 = scalar_select %p122, %s121, 15
      %s124 = ssub.s32 %s29, %s43
      %s125 = ssub.s32 %s119, %s123
      %s126 = sor.u32 %s124, %s125
      %s127 = ssub.s32 %s28, %s47
      %s128 = sor.u32 %s126, %s127
      %p129 = scmp.eq.s32.totalorder %s128, 0
      %s131 = sadd.s32 %s130, 1
      %s132 = scalar_select %p129, %s130, %s131
      %p135 = pneg %p129
      %p136 = scmp.eq.s32.totalorder %s21, 1
      %p137 = por %p135, %p136
      %p138 = scmp.ne.s32.totalorder %s130, %s133
      %p139 = scmp.eq.s32.totalorder %s21, 0
      %p140 = por %p138, %p139
      %p141 = scmp.ne.s32.totalorder %s130, %s133
      %p142 = scmp.eq.s32.totalorder %s26, 1
      %p143 = por %p141, %p142
      %p144 = scmp.ne.s32.totalorder %s133, %s134
      %p145 = scmp.eq.s32.totalorder %s26, 0
      %p146 = por %p144, %p145
      %p147 = scmp.ne.s32.totalorder %s133, %s134
      %p148 = scmp.eq.s32.totalorder %s27, 1
      %p149 = por %p147, %p148
      %p151 = scmp.ne.s32.totalorder %s134, %s150
      %p152 = scmp.eq.s32.totalorder %s27, 0
      %p153 = por %p151, %p152
      %s154 = ssub.s32 %s28, %s47
      %p155 = scmp.eq.s32.totalorder %s154, 0
      %s157 = sadd.s32 %s156, 1
      %s158 = scalar_select %p155, %s156, %s157
      %p161 = pneg %p155
      %p162 = scmp.eq.s32.totalorder %s21, 1
      %p163 = por %p161, %p162
      %p164 = scmp.ne.s32.totalorder %s156, %s159
      %p165 = scmp.eq.s32.totalorder %s21, 0
      %p166 = por %p164, %p165
      %p167 = scmp.ne.s32.totalorder %s156, %s159
      %p168 = scmp.eq.s32.totalorder %s26, 1
      %p169 = por %p167, %p168
      %p170 = scmp.ne.s32.totalorder %s159, %s160
      %p171 = scmp.eq.s32.totalorder %s26, 0
      %p172 = por %p170, %p171
      %p173 = scmp.ne.s32.totalorder %s159, %s160
      %p174 = scmp.eq.s32.totalorder %s27, 1
      %p175 = por %p173, %p174
      %p177 = scmp.ne.s32.totalorder %s160, %s176
      %p178 = scmp.eq.s32.totalorder %s27, 0
      %p179 = por %p177, %p178
      %s180 = ssub.s32 %s28, %s47
      %p181 = scmp.eq.s32.totalorder %s180, 0
      %s183 = sadd.s32 %s182, 1
      %s184 = scalar_select %p181, %s182, %s183
      %p187 = pneg %p181
      %p188 = scmp.eq.s32.totalorder %s21, 1
      %p189 = por %p187, %p188
      %p190 = scmp.ne.s32.totalorder %s182, %s185
      %p191 = scmp.eq.s32.totalorder %s21, 0
      %p192 = por %p190, %p191
      %p193 = scmp.ne.s32.totalorder %s182, %s185
      %p194 = scmp.eq.s32.totalorder %s26, 1
      %p195 = por %p193, %p194
      %p196 = scmp.ne.s32.totalorder %s185, %s186
      %p197 = scmp.eq.s32.totalorder %s26, 0
      %p198 = por %p196, %p197
      %p199 = scmp.ne.s32.totalorder %s185, %s186
      %p200 = scmp.eq.s32.totalorder %s27, 1
      %p201 = por %p199, %p200
      %p203 = scmp.ne.s32.totalorder %s186, %s202
      %p204 = scmp.eq.s32.totalorder %s27, 0
      %p205 = por %p203, %p204
      %s206 = ssub.s32 %s29, %s43
      %s207 = ssub.s32 %s30, %s39
      %s208 = sor.u32 %s206, %s207
      %s209 = ssub.s32 %s28, %s47
      %s210 = sor.u32 %s208, %s209
      %p211 = scmp.eq.s32.totalorder %s210, 0
      %s213 = sadd.s32 %s212, 1
      %s214 = scalar_select %p211, %s212, %s213
      %p217 = pneg %p211
      %p218 = scmp.eq.s32.totalorder %s21, 1
      %p219 = por %p217, %p218
      %p220 = scmp.ne.s32.totalorder %s212, %s215
      %p221 = scmp.eq.s32.totalorder %s21, 0
      %p222 = por %p220, %p221
      %p223 = scmp.ne.s32.totalorder %s212, %s215
      %p224 = scmp.eq.s32.totalorder %s26, 1
      %p225 = por %p223, %p224
      %p226 = scmp.ne.s32.totalorder %s215, %s216
      %p227 = scmp.eq.s32.totalorder %s26, 0
      %p228 = por %p226, %p227
      %p229 = scmp.ne.s32.totalorder %s215, %s216
      %p230 = scmp.eq.s32.totalorder %s27, 1
      %p231 = por %p229, %p230
      %p233 = scmp.ne.s32.totalorder %s216, %s232
      %p234 = scmp.eq.s32.totalorder %s27, 0
      %p235 = por %p233, %p234
      %p236 = scmp.le.s32.totalorder 1, %s21
      %p237 = scmp.lt.s32.totalorder %s21, 3
      %p238 = pnand %p236, %p237
      %p239 = pneg %p238
      // Predicated region
      $region9: #{tpu_custom_call.1} parent=5 // pred_check
        _
      $region10: #{tpu_custom_call.1} parent=5 // pred_check_branch
        %241 = sbr.rel (%p238) target = $region12
      $region11: #{tpu_custom_call.1} parent=5 // pred_region
        %s242 = ssub.s32 %s21, 1
        // Predicated region
        $region13: #{tpu_custom_call.1} parent=11 // pred_check
          %p243 = pneg %p172
        $region14: #{tpu_custom_call.1} parent=11 // pred_check_branch
          %245 = sbr.rel (%p243) target = $region16
        $region15: #{tpu_custom_call.1} parent=11 // pred_region
          %247 = vsyncadd [#allocation9], 0
          %s248 = smul.addr %s31, 8
          %s249 = scalar_lea.hbm %s3, %s248
          %s250 = sshll.u32 %s249, 4
          %s251 = int_to_ptr.hbm [resolvable:$true] %s250
          %s252 = sshll.u32 [#allocation8], 4
          %s253 = int_to_ptr.vmem [resolvable:$true] %s252
          %258 = dma.hbm_to_vmem [thread:$0]  %s251, 256, %s253, [#allocation9], 128, 128, 8
        $region16: #{tpu_custom_call.1} parent=11 // pred_fallthru
          _
        // Predicated region
        $region17: #{tpu_custom_call.1} parent=11 // pred_check
          %p259 = pneg %p198
        $region18: #{tpu_custom_call.1} parent=11 // pred_check_branch
          %261 = sbr.rel (%p259) target = $region20
        $region19: #{tpu_custom_call.1} parent=11 // pred_region
          %p262 = scmp.lt.s32.totalorder %s31, 0
          %s263 = scalar_select %p262, %s31, 0
          %s264 = scalar_lea.vmem %s4, %s263
        $region20: #{tpu_custom_call.1} parent=11 // pred_fallthru
          _
      $region12: #{tpu_custom_call.1} parent=5 // pred_fallthru
        _
      %p265 = scmp.lt.s32.totalorder %s21, 2
      // Predicated region
      $region21: #{tpu_custom_call.1} parent=5 // pred_check
        %p266 = pneg %p265
      $region22: #{tpu_custom_call.1} parent=5 // pred_check_branch
        %268 = sbr.rel (%p266) target = $region24
      $region23: #{tpu_custom_call.1} parent=5 // pred_region
        // Predicated region
        $region25: #{tpu_custom_call.1} parent=23 // pred_check
          %p269 = pneg %p64
        $region26: #{tpu_custom_call.1} parent=23 // pred_check_branch
          %271 = sbr.rel (%p269) target = $region28
        $region27: #{tpu_custom_call.1} parent=23 // pred_region
          %s272 = sand.u32 %s54, 1
          %s273 = scalar_lea.sflag [#allocation3], %s272
          %s274 = sand.u32 %s54, 1
          %s275 = smul.addr %s274, 256
          %s276 = scalar_lea.vmem [#allocation2], %s275
          %s277 = smul.u32 16, %s30
          %279 = vsyncadd %s273, 0
          %s280 = smul.addr %s277, 2
          %s281 = sadd.s32 %s28, %s280
          %s282 = smul.addr %s29, 32
          %s283 = sadd.s32 %s281, %s282
          %s284 = smul.addr %s283, 8
          %s285 = scalar_lea.hbm %s0, %s284
          %s286 = sshll.u32 %s285, 4
          %s287 = int_to_ptr.hbm [resolvable:$true] %s286
          %s288 = sshll.u32 %s276, 4
          %s289 = int_to_ptr.vmem [resolvable:$true] %s288
          %294 = dma.hbm_to_vmem [thread:$0]  %s287, 4096, %s289, %s273, 128, 128, 8
        $region28: #{tpu_custom_call.1} parent=23 // pred_fallthru
          _
        // Predicated region
        $region29: #{tpu_custom_call.1} parent=23 // pred_check
          %p295 = pneg %p102
        $region30: #{tpu_custom_call.1} parent=23 // pred_check_branch
          %297 = sbr.rel (%p295) target = $region32
        $region31: #{tpu_custom_call.1} parent=23 // pred_region
          %s298 = sand.u32 %s21, 1
          %s299 = scalar_lea.sflag [#allocation6], %s298
          %s300 = sand.u32 %s92, 1
          %s301 = smul.addr %s300, 16
          %s302 = scalar_lea.vmem [#allocation5], %s301
          %s303 = smul.u32 %s30, 16
          %s304 = ssub.s32 %s303, 1
          %p305 = scmp.gt.s32.totalorder %s304, 0
          %s306 = scalar_select %p305, %s304, 0
          %308 = vsyncadd %s299, 0
          %s309 = smul.addr %s306, 2
          %s310 = sadd.s32 %s28, %s309
          %s311 = smul.addr %s29, 32
          %s312 = sadd.s32 %s310, %s311
          %s313 = smul.addr %s312, 8
          %s314 = scalar_lea.hbm %s1, %s313
          %s315 = sshll.u32 %s314, 4
          %s316 = int_to_ptr.hbm [resolvable:$true] %s315
          %s317 = sshll.u32 %s302, 4
          %s318 = int_to_ptr.vmem [resolvable:$true] %s317
          %323 = dma.hbm_to_vmem [thread:$0]  %s316, 256, %s318, %s299, 128, 128, 8
        $region32: #{tpu_custom_call.1} parent=23 // pred_fallthru
          _
        // Predicated region
        $region33: #{tpu_custom_call.1} parent=23 // pred_check
          %p324 = pneg %p140
        $region34: #{tpu_custom_call.1} parent=23 // pred_check_branch
          %326 = sbr.rel (%p324) target = $region36
        $region35: #{tpu_custom_call.1} parent=23 // pred_region
          %s327 = sand.u32 %s21, 1
          %s328 = scalar_lea.sflag [#allocation6], %s327
          %s329 = sand.u32 %s130, 1
          %s330 = smul.addr %s329, 16
          %s331 = scalar_lea.vmem [#allocation7], %s330
          %s332 = sadd.s32 %s30, 1
          %s333 = smul.u32 %s332, 16
          %p334 = scmp.lt.s32.totalorder %s333, 15
          %s335 = scalar_select %p334, %s333, 15
          %337 = vsyncadd %s328, 0
          %s338 = smul.addr %s335, 2
          %s339 = sadd.s32 %s28, %s338
          %s340 = smul.addr %s29, 32
          %s341 = sadd.s32 %s339, %s340
          %s342 = smul.addr %s341, 8
          %s343 = scalar_lea.hbm %s2, %s342
          %s344 = sshll.u32 %s343, 4
          %s345 = int_to_ptr.hbm [resolvable:$true] %s344
          %s346 = sshll.u32 %s331, 4
          %s347 = int_to_ptr.vmem [resolvable:$true] %s346
          %352 = dma.hbm_to_vmem [thread:$0]  %s345, 256, %s347, %s328, 128, 128, 8
        $region36: #{tpu_custom_call.1} parent=23 // pred_fallthru
          _
      $region24: #{tpu_custom_call.1} parent=5 // pred_fallthru
        _
      %p353 = scmp.le.s32.totalorder 1, %s21
      %p354 = scmp.lt.s32.totalorder %s21, 3
      %p355 = pnand %p353, %p354
      %p356 = pneg %p355
      // Predicated region
      $region37: #{tpu_custom_call.1} parent=5 // pred_check
        _
      $region38: #{tpu_custom_call.1} parent=5 // pred_check_branch
        %358 = sbr.rel (%p355) target = $region40
      $region39: #{tpu_custom_call.1} parent=5 // pred_region
        %s359 = ssub.s32 %s21, 1
        %s360 = sand.u32 %s57, 1
        %s361 = scalar_lea.sflag [#allocation3], %s360
        %s362 = sand.u32 %s57, 1
        %s363 = smul.addr %s362, 256
        %s364 = scalar_lea.vmem [#allocation2], %s363
        // Predicated region
        $region41: #{tpu_custom_call.1} parent=39 // pred_check
          %p365 = pneg %p70
        $region42: #{tpu_custom_call.1} parent=39 // pred_check_branch
          %367 = sbr.rel (%p365) target = $region44
        $region43: #{tpu_custom_call.1} parent=39 // pred_region
          %369 = dma.done %s361, 4096
        $region44: #{tpu_custom_call.1} parent=39 // pred_fallthru
          _
        %s370 = sand.u32 %s26, 1
        %s371 = scalar_lea.sflag [#allocation6], %s370
        %s372 = sand.u32 %s95, 1
        %s373 = smul.addr %s372, 16
        %s374 = scalar_lea.vmem [#allocation5], %s373
        // Predicated region
        $region45: #{tpu_custom_call.1} parent=39 // pred_check
          %p375 = pneg %p108
        $region46: #{tpu_custom_call.1} parent=39 // pred_check_branch
          %377 = sbr.rel (%p375) target = $region48
        $region47: #{tpu_custom_call.1} parent=39 // pred_region
          %379 = dma.done %s371, 256
        $region48: #{tpu_custom_call.1} parent=39 // pred_fallthru
          _
        %s380 = sand.u32 %s26, 1
        %s381 = scalar_lea.sflag [#allocation6], %s380
        %s382 = sand.u32 %s133, 1
        %s383 = smul.addr %s382, 16
        %s384 = scalar_lea.vmem [#allocation7], %s383
        // Predicated region
        $region49: #{tpu_custom_call.1} parent=39 // pred_check
          %p385 = pneg %p146
        $region50: #{tpu_custom_call.1} parent=39 // pred_check_branch
          %387 = sbr.rel (%p385) target = $region52
        $region51: #{tpu_custom_call.1} parent=39 // pred_region
          %389 = dma.done %s381, 256
        $region52: #{tpu_custom_call.1} parent=39 // pred_fallthru
          _
        // Predicated region
        $region53: #{tpu_custom_call.1} parent=39 // pred_check
          %p390 = pneg %p172
        $region54: #{tpu_custom_call.1} parent=39 // pred_check_branch
          %392 = sbr.rel (%p390) target = $region56
        $region55: #{tpu_custom_call.1} parent=39 // pred_region
          %394 = dma.done [#allocation9], 256
        $region56: #{tpu_custom_call.1} parent=39 // pred_fallthru
          _
        %s395 = sand.u32 %s57, 1
        %s396 = scalar_lea.sflag [#allocation3], %s395
        %s397 = sand.u32 %s57, 1
        %s398 = smul.addr %s397, 256
        %s399 = scalar_lea.vmem [#allocation2], %s398
        %p400 = pneg %p70
        %p401 = pneg %p67
        %s402 = sand.u32 %s26, 1
        %s403 = scalar_lea.sflag [#allocation6], %s402
        %s404 = sand.u32 %s95, 1
        %s405 = smul.addr %s404, 16
        %s406 = scalar_lea.vmem [#allocation5], %s405
        %p407 = pneg %p108
        %p408 = pneg %p105
        %s409 = sand.u32 %s26, 1
        %s410 = scalar_lea.sflag [#allocation6], %s409
        %s411 = sand.u32 %s133, 1
        %s412 = smul.addr %s411, 16
        %s413 = scalar_lea.vmem [#allocation7], %s412
        %p414 = pneg %p146
        %p415 = pneg %p143
        %p416 = pneg %p172
        %p417 = pneg %p169
        %p418 = scmp.lt.s32.totalorder %s31, 0
        %s419 = scalar_select %p418, %s31, 0
        %s420 = scalar_lea.vmem %s4, %s419
        %p421 = pneg %p198
        %p422 = pneg %p195
        %p423 = pneg %p228
        %p424 = pneg %p225
        %s425 = sand.u32 %s215, 1
        %s426 = scalar_lea.sflag [#allocation4], %s425
        %s427 = sand.u32 %s215, 1
        %s428 = smul.addr %s427, 256
        %s429 = scalar_lea.vmem [#allocation10], %s428
        %s430 = smul.u32 16, %s33
        %s431 = smul.u32 %s33, 16
        %s432 = ssub.s32 %s431, 1
        %p433 = scmp.gt.s32.totalorder %s432, 0
        %s434 = scalar_select %p433, %s432, 0
        %s435 = sadd.s32 %s33, 1
        %s436 = smul.u32 %s435, 16
        %p437 = scmp.lt.s32.totalorder %s436, 15
        %s438 = scalar_select %p437, %s436, 15
        %p439 = scmp.lt.s32.totalorder %s31, 0
        %s440 = scalar_select %p439, %s31, 0
        %s441 = scalar_lea.vmem %s4, %s440
        %s442 = smul.u32 16, %s33
        %p443 = scmp.gt.s32.totalorder %s33, 0
        %s444 = scalar_select %p443, 1, 0
        %s445 = scvt.s32.f32 %s444
        %p446 = scmp.lt.s32.totalorder %s33, 0
        %s447 = scalar_select %p446, 1, 0
        %s448 = scvt.s32.f32 %s447
        %v449 = vld [vmem:[#allocation8] sm:$0xff]
        %v450 = vld [vmem:[#allocation8 + $0x8] sm:$0x1]
        %v451 = vld [vmem:[%s441] sm:$0x1]
        %v452 = vlaneseq
        %v453 = vshrl.u32 %v452, 7
        %v454 = vadd.s32 %v453, 8
        %vm455 = vcmp.eq.s32.totalorder %v453, 0
        %vm456 = vcmp.eq.s32.totalorder %v454, 0
        %vm457 = vcmp.eq.s32.totalorder %v453, 15
        %vm458 = vcmp.eq.s32.totalorder %v454, 15
        %v459 = vld [vmem:[%s374] sm:$0xff]
        %v460 = vld [vmem:[%s374 + $0x8] sm:$0xff]
        %v461 = vstv %s445
        %v462 = vmul.f32 %v459, %v461
        %v463 = vmul.f32 %v460, %v461
        %v464 = vld [vmem:[%s384] sm:$0xff]
        %v465 = vld [vmem:[%s384 + $0x8] sm:$0xff]
        %v466 = vstv %s448
        %v467 = vmul.f32 %v464, %v466
        %v468 = vmul.f32 %v465, %v466
        %v469 = vld [vmem:[%s364] sm:$0xff]
        %v470 = vld [vmem:[%s364 + $0x8] sm:$0xff]
        loop: start=0, step=1, limit=15
        $region57: #{tpu_custom_call.1} parent=39 // loop_pre_header
          _
        $region58: #{tpu_custom_call.1} parent=39 // loop_header
          %s472 = sphi 0, %s476
          %p473 = scmp.ge.s32.totalorder %s472, 15
          %v477 = vphi %v462, %v479
          %v478 = vphi %v463, %v480
          %v479 = vphi %v469, %v484
          %v480 = vphi %v470, %v485
        $region59: #{tpu_custom_call.1} parent=39 // loop_header_branch
          %475 = sbr.rel (%p473) target = $region63
        $region60: #{tpu_custom_call.1} parent=39 // loop_body
          %s481 = sadd.s32 %s472, 1
          %s482 = smul.u32 %s481, 16
          %s483 = scalar_lea.vmem %s364, %s482 [#allocation2]
          %v484 = vld [vmem:[%s483] sm:$0xff]
          %v485 = vld [vmem:[%s483 + $0x8] sm:$0xff]
          %v486 = vperm.slane %v449, 4
          %v487 = vmul.f32 %v486, %v479
          %v488 = vmul.f32 %v486, %v480
          %v490 = vperm.slane %v451, 0
          %v492 = vadd.f32 %v490, %v487
          %v493 = vadd.f32 %v490, %v488
          %v494 = vrot.slane %v477, 7
          %v495 = vrot.slane %v478, 7
          %vm496 = vcmp.lt.s32.totalorder %v453, 1
          %v497 = vsel %vm496, %v494, %v495
          %v498 = vsel %vm496, %v495, %v494
          %v499 = vsel %vm455, 0.0, %v498
          %v500 = vsel %vm456, 0.0, %v497
          %v501 = vperm.slane %v449, 0
          %v502 = vmul.f32 %v501, %v499
          %v503 = vmul.f32 %v501, %v500
          %v504 = vadd.f32 %v492, %v502
          %v505 = vadd.f32 %v493, %v503
          %v506 = vperm.slane %v449, 1
          %v507 = vmul.f32 %v506, %v477
          %v508 = vmul.f32 %v506, %v478
          %v509 = vadd.f32 %v504, %v507
          %v510 = vadd.f32 %v505, %v508
          %v511 = vrot.slane %v477, 1
          %v512 = vrot.slane %v478, 1
          %vm513 = vcmp.lt.s32.totalorder %v453, 7
          %v514 = vsel %vm513, %v511, %v512
          %v515 = vsel %vm513, %v512, %v511
          %v516 = vsel %vm457, 0.0, %v514
          %v517 = vsel %vm458, 0.0, %v515
          %v518 = vperm.slane %v449, 2
          %v519 = vmul.f32 %v518, %v516
          %v520 = vmul.f32 %v518, %v517
          %v521 = vadd.f32 %v509, %v519
          %v522 = vadd.f32 %v510, %v520
          %v523 = vrot.slane %v479, 7
          %v524 = vrot.slane %v480, 7
          %v525 = vsel %vm496, %v523, %v524
          %v526 = vsel %vm496, %v524, %v523
          %v527 = vsel %vm455, 0.0, %v526
          %v528 = vsel %vm456, 0.0, %v525
          %v529 = vperm.slane %v449, 3
          %v530 = vmul.f32 %v529, %v527
          %v531 = vmul.f32 %v529, %v528
          %v532 = vadd.f32 %v521, %v530
          %v533 = vadd.f32 %v522, %v531
          %v534 = vrot.slane %v479, 1
          %v535 = vrot.slane %v480, 1
          %v536 = vsel %vm513, %v534, %v535
          %v537 = vsel %vm513, %v535, %v534
          %v538 = vsel %vm457, 0.0, %v536
          %v539 = vsel %vm458, 0.0, %v537
          %v540 = vperm.slane %v449, 5
          %v541 = vmul.f32 %v540, %v538
          %v542 = vmul.f32 %v540, %v539
          %v543 = vadd.f32 %v532, %v541
          %v544 = vadd.f32 %v533, %v542
          %v545 = vrot.slane %v484, 7
          %v546 = vrot.slane %v485, 7
          %v547 = vsel %vm496, %v545, %v546
          %v548 = vsel %vm496, %v546, %v545
          %v549 = vsel %vm455, 0.0, %v548
          %v550 = vsel %vm456, 0.0, %v547
          %v551 = vperm.slane %v449, 6
          %v552 = vmul.f32 %v551, %v549
          %v553 = vmul.f32 %v551, %v550
          %v554 = vadd.f32 %v543, %v552
          %v555 = vadd.f32 %v544, %v553
          %v556 = vperm.slane %v449, 7
          %v557 = vmul.f32 %v556, %v484
          %v558 = vmul.f32 %v556, %v485
          %v559 = vadd.f32 %v554, %v557
          %v560 = vadd.f32 %v555, %v558
          %v561 = vrot.slane %v484, 1
          %v562 = vrot.slane %v485, 1
          %v563 = vsel %vm513, %v561, %v562
          %v564 = vsel %vm513, %v562, %v561
          %v565 = vsel %vm457, 0.0, %v563
          %v566 = vsel %vm458, 0.0, %v564
          %v567 = vperm.slane %v450, 0
          %v568 = vmul.f32 %v567, %v565
          %v569 = vmul.f32 %v567, %v566
          %v570 = vadd.f32 %v559, %v568
          %v571 = vadd.f32 %v560, %v569
          %s572 = smul.u32 %s472, 16
          %s573 = scalar_lea.vmem %s429, %s572 [#allocation10]
          %574 = vst [vmem:[%s573] sm:$0xff] %v570
          %575 = vst [vmem:[%s573 + $0x8] sm:$0xff] %v571
        $region61: #{tpu_custom_call.1} parent=39 // loop_footer
          %s476 = sadd.s32 1, %s472
        $region62: #{tpu_custom_call.1} parent=39 // loop_footer_branch
          %471 = sbr.rel target = $region58
        $region63: #{tpu_custom_call.1} parent=39 // loop_exit
          _
        %v576 = vperm.slane %v449, 4
        %v577 = vmul.f32 %v576, %v479
        %v578 = vmul.f32 %v576, %v480
        %v580 = vperm.slane %v451, 0
        %v582 = vadd.f32 %v580, %v577
        %v583 = vadd.f32 %v580, %v578
        %v584 = vrot.slane %v477, 7
        %v585 = vrot.slane %v478, 7
        %vm586 = vcmp.lt.s32.totalorder %v453, 1
        %v587 = vsel %vm586, %v584, %v585
        %v588 = vsel %vm586, %v585, %v584
        %v589 = vsel %vm455, 0.0, %v588
        %v590 = vsel %vm456, 0.0, %v587
        %v591 = vperm.slane %v449, 0
        %v592 = vmul.f32 %v591, %v589
        %v593 = vmul.f32 %v591, %v590
        %v594 = vadd.f32 %v582, %v592
        %v595 = vadd.f32 %v583, %v593
        %v596 = vperm.slane %v449, 1
        %v597 = vmul.f32 %v596, %v477
        %v598 = vmul.f32 %v596, %v478
        %v599 = vadd.f32 %v594, %v597
        %v600 = vadd.f32 %v595, %v598
        %v601 = vrot.slane %v477, 1
        %v602 = vrot.slane %v478, 1
        %vm603 = vcmp.lt.s32.totalorder %v453, 7
        %v604 = vsel %vm603, %v601, %v602
        %v605 = vsel %vm603, %v602, %v601
        %v606 = vsel %vm457, 0.0, %v604
        %v607 = vsel %vm458, 0.0, %v605
        %v608 = vperm.slane %v449, 2
        %v609 = vmul.f32 %v608, %v606
        %v610 = vmul.f32 %v608, %v607
        %v611 = vadd.f32 %v599, %v609
        %v612 = vadd.f32 %v600, %v610
        %v613 = vrot.slane %v479, 7
        %v614 = vrot.slane %v480, 7
        %v615 = vsel %vm586, %v613, %v614
        %v616 = vsel %vm586, %v614, %v613
        %v617 = vsel %vm455, 0.0, %v616
        %v618 = vsel %vm456, 0.0, %v615
        %v619 = vperm.slane %v449, 3
        %v620 = vmul.f32 %v619, %v617
        %v621 = vmul.f32 %v619, %v618
        %v622 = vadd.f32 %v611, %v620
        %v623 = vadd.f32 %v612, %v621
        %v624 = vrot.slane %v479, 1
        %v625 = vrot.slane %v480, 1
        %v626 = vsel %vm603, %v624, %v625
        %v627 = vsel %vm603, %v625, %v624
        %v628 = vsel %vm457, 0.0, %v626
        %v629 = vsel %vm458, 0.0, %v627
        %v630 = vperm.slane %v449, 5
        %v631 = vmul.f32 %v630, %v628
        %v632 = vmul.f32 %v630, %v629
        %v633 = vadd.f32 %v622, %v631
        %v634 = vadd.f32 %v623, %v632
        %v635 = vrot.slane %v467, 7
        %v636 = vrot.slane %v468, 7
        %v637 = vsel %vm586, %v635, %v636
        %v638 = vsel %vm586, %v636, %v635
        %v639 = vsel %vm455, 0.0, %v638
        %v640 = vsel %vm456, 0.0, %v637
        %v641 = vperm.slane %v449, 6
        %v642 = vmul.f32 %v641, %v639
        %v643 = vmul.f32 %v641, %v640
        %v644 = vadd.f32 %v633, %v642
        %v645 = vadd.f32 %v634, %v643
        %v646 = vperm.slane %v449, 7
        %v647 = vmul.f32 %v646, %v467
        %v648 = vmul.f32 %v646, %v468
        %v649 = vadd.f32 %v644, %v647
        %v650 = vadd.f32 %v645, %v648
        %v651 = vrot.slane %v467, 1
        %v652 = vrot.slane %v468, 1
        %v653 = vsel %vm603, %v651, %v652
        %v654 = vsel %vm603, %v652, %v651
        %v655 = vsel %vm457, 0.0, %v653
        %v656 = vsel %vm458, 0.0, %v654
        %v657 = vperm.slane %v450, 0
        %v658 = vmul.f32 %v657, %v655
        %v659 = vmul.f32 %v657, %v656
        %v660 = vadd.f32 %v649, %v658
        %v661 = vadd.f32 %v650, %v659
        %s662 = scalar_lea.vmem %s429, 240 [#allocation10]
        %663 = vst [vmem:[%s662] sm:$0xff] %v660
        %664 = vst [vmem:[%s662 + $0x8] sm:$0xff] %v661
        %s665 = sand.u32 %s215, 1
        %s666 = scalar_lea.sflag [#allocation4], %s665
        %s667 = sand.u32 %s215, 1
        %s668 = smul.addr %s667, 256
        %s669 = scalar_lea.vmem [#allocation10], %s668
        // Predicated region
        $region64: #{tpu_custom_call.1} parent=39 // pred_check
          %p670 = pneg %p225
        $region65: #{tpu_custom_call.1} parent=39 // pred_check_branch
          %672 = sbr.rel (%p670) target = $region67
        $region66: #{tpu_custom_call.1} parent=39 // pred_region
          %s673 = smul.u32 16, %s33
          %675 = vsyncadd %s666, 0
          %s676 = smul.addr %s673, 2
          %s677 = sadd.s32 %s31, %s676
          %s678 = smul.addr %s32, 32
          %s679 = sadd.s32 %s677, %s678
          %s680 = smul.addr %s679, 8
          %s681 = scalar_lea.hbm %s5, %s680
          %s682 = sshll.u32 %s669, 4
          %s683 = int_to_ptr.vmem [resolvable:$true] %s682
          %s684 = sshll.u32 %s681, 4
          %s685 = int_to_ptr.hbm [resolvable:$true] %s684
          %690 = dma.vmem_to_hbm [thread:$0]  %s683, 4096, %s685, %s666, 128, 128, 8
        $region67: #{tpu_custom_call.1} parent=39 // pred_fallthru
          _
      $region40: #{tpu_custom_call.1} parent=5 // pred_fallthru
        _
      %p691 = scmp.le.s32.totalorder 2, %s21
      // Predicated region
      $region68: #{tpu_custom_call.1} parent=5 // pred_check
        %p692 = pneg %p691
      $region69: #{tpu_custom_call.1} parent=5 // pred_check_branch
        %694 = sbr.rel (%p692) target = $region71
      $region70: #{tpu_custom_call.1} parent=5 // pred_region
        %s695 = ssub.s32 %s21, 2
        // Predicated region
        $region72: #{tpu_custom_call.1} parent=70 // pred_check
          %p696 = pneg %p231
        $region73: #{tpu_custom_call.1} parent=70 // pred_check_branch
          %698 = sbr.rel (%p696) target = $region75
        $region74: #{tpu_custom_call.1} parent=70 // pred_region
          %s699 = sand.u32 %s216, 1
          %s700 = scalar_lea.sflag [#allocation4], %s699
          %s701 = sand.u32 %s216, 1
          %s702 = smul.addr %s701, 256
          %s703 = scalar_lea.vmem [#allocation10], %s702
          %705 = dma.done %s700, 4096
        $region75: #{tpu_custom_call.1} parent=70 // pred_fallthru
          _
      $region71: #{tpu_custom_call.1} parent=5 // pred_fallthru
        _
    $region6: #{tpu_custom_call.1} parent=1 // loop_footer
      %s25 = sadd.s32 1, %s21
    $region7: #{tpu_custom_call.1} parent=1 // loop_footer_branch
      %20 = sbr.rel target = $region3
    $region8: #{tpu_custom_call.1} parent=1 // loop_exit
      _
    %706 = vsyncpa [#allocation3], 1
    %s707 = scalar_lea.sflag [#allocation3], 1
    %708 = vsyncpa %s707, 1
    %709 = vsyncpa [#allocation6], 1
    %s710 = scalar_lea.sflag [#allocation6], 1
    %711 = vsyncpa %s710, 1
    %712 = vsyncpa [#allocation9], 1
    %713 = vsyncpa [#allocation4], 1
    %s714 = scalar_lea.sflag [#allocation4], 1
    %715 = vsyncpa %s714, 1

</llo_original>
